<compile_context>
chip_gen: v7x
topology: tpu7x:2x2x1
jax: 0.10.0
libtpu: 0.0.40
codegen_flags: <defaults>
</compile_context>

<pallas_src>
import jax
import jax.numpy as jnp
from jax.experimental import pallas as pl
from jax.experimental.pallas import tpu as pltpu


def _round_up(x, m):
    return ((x + m - 1) // m) * m


# ----------------------------------------------------------------------------- kernels
def _resident_kernel(x_ref, w1_ref, b_ref, w2_ref, o_ref):
    """Both (Hp, Hp) folded weights VMEM-resident (constant index_map, single-buffered)."""
    xb = x_ref[...].astype(jnp.bfloat16)                       # bf16 MXU input
    h = jnp.dot(xb, w1_ref[...], preferred_element_type=jnp.float32) + b_ref[0:1, :]
    h = jnp.maximum(h, 0.0)                                    # ReLU (f32 VPU)
    # dropout: identity in eval mode
    h2 = jnp.dot(h.astype(jnp.bfloat16), w2_ref[...],
                 preferred_element_type=jnp.float32) + b_ref[1:2, :]
    # residual re-read from VMEM ref -> the f32 x tile is not live across both matmuls
    o_ref[...] = jnp.maximum(h2 + x_ref[...], 0.0).astype(o_ref.dtype)


def _streaming_kernel(x_ref, b_ref, w1_hbm, w2_hbm, o_ref, h_ref, wbuf, sem):
    """Large-H path: weights in HBM, column slabs manually double-buffered into VMEM."""
    nslabs, _, tn = w1_hbm.shape

    def start(w_hbm, j, slot):
        pltpu.make_async_copy(w_hbm.at[j], wbuf.at[slot], sem.at[slot]).start()

    def wait(w_hbm, j, slot):
        pltpu.make_async_copy(w_hbm.at[j], wbuf.at[slot], sem.at[slot]).wait()

    xb = x_ref[...].astype(jnp.bfloat16)

    # ---- layer 1: h = relu(x @ W1 + b1), streaming W1 column slabs (full K per slab) ----
    start(w1_hbm, 0, 0)
    for j in range(nslabs):                       # static unroll; nslabs is compile-time
        slot = j & 1
        wait(w1_hbm, j, slot)
        if j + 1 < nslabs:
            start(w1_hbm, j + 1, 1 - slot)
        else:
            start(w2_hbm, 0, 1 - slot)            # prefetch first W2 slab behind last W1 matmul
        acc = jnp.dot(xb, wbuf[slot], preferred_element_type=jnp.float32)
        acc = acc + b_ref[0:1, j * tn:(j + 1) * tn]
        h_ref[:, j * tn:(j + 1) * tn] = jnp.maximum(acc, 0.0).astype(h_ref.dtype)

    # ---- layer 2: out = relu(h @ W2 + b2 + x), streaming W2 column slabs ----
    for j in range(nslabs):
        slot = (nslabs + j) & 1                   # continue double-buffer parity
        wait(w2_hbm, j, slot)
        if j + 1 < nslabs:
            start(w2_hbm, j + 1, 1 - slot)
        acc = jnp.dot(h_ref[...], wbuf[slot], preferred_element_type=jnp.float32)
        acc = acc + b_ref[1:2, j * tn:(j + 1) * tn]
        acc = acc + x_ref[:, j * tn:(j + 1) * tn]             # residual (f32, slab-local read)
        o_ref[:, j * tn:(j + 1) * tn] = jnp.maximum(acc, 0.0).astype(o_ref.dtype)


# ----------------------------------------------------------------------------- wrapper
def _choose_tb(B, cap=256):
    """Batch tile: multiple of 8, capped, and >= 2 tiles when B > 8 (v7x megacore)."""
    if B <= 8:
        return B
    return min(cap, _round_up(pl.cdiv(B, 2), 8))


def residual_block(x, params, *, tb=256, slab_n=None, force_stream=False):
    """x: (B, H) float32. params: BN-folded, Hp-padded parameters from make_params()."""
    B, H = x.shape
    Hp = params["Hp"]
    assert H == params["H"]

    xp = jnp.pad(x, ((0, 0), (0, Hp - H))) if Hp != H else x
    tb = _choose_tb(B, tb)
    grid = (pl.cdiv(B, tb),)
    nt = grid[0]

    row_spec = pl.BlockSpec((tb, Hp), lambda i: (i, 0))
    # grid-invariant operand -> single buffer: no overlap to gain, half the VMEM
    bias_spec = pl.BlockSpec((2, Hp), lambda i: (0, 0), pipeline_mode=pl.Buffered(1))

    w_itemsize = params["w1"].dtype.itemsize
    resident_w_bytes = 2 * Hp * Hp * w_itemsize
    use_stream = force_stream or resident_w_bytes > (24 << 20)

    flops = 4 * B * Hp * Hp                       # two (B,Hp)x(Hp,Hp) matmuls

    if not use_stream:
        mat_spec = pl.BlockSpec((Hp, Hp), lambda i: (0, 0), pipeline_mode=pl.Buffered(1))
        needed = (resident_w_bytes                # single-buffered bf16 weights
                  + 8 * Hp * 4                    # (2,Hp) bias block (pads to 8 sublanes)
                  + 2 * 2 * tb * Hp * 4           # double-buffered x / out tiles (f32)
                  + (4 << 20))                    # pipeline state / headroom
        vmem_limit = min(56 << 20, max(32 << 20, needed))
        cost = pl.CostEstimate(
            flops=flops, transcendentals=0,
            bytes_accessed=resident_w_bytes + 2 * Hp * 4 + 2 * B * Hp * 4)
        out = pl.pallas_call(
            _resident_kernel,
            out_shape=jax.ShapeDtypeStruct((B, Hp), x.dtype),
            grid_spec=pltpu.PrefetchScalarGridSpec(
                num_scalar_prefetch=0,
                grid=grid,
                in_specs=[row_spec, mat_spec, bias_spec, mat_spec],
                out_specs=row_spec,
            ),
            compiler_params=pltpu.CompilerParams(
                dimension_semantics=("parallel",),      # shard batch tiles across v7x's 2 TCs
                vmem_limit_bytes=vmem_limit),
            cost_estimate=cost,
        )(xp, params["w1"], params["b"], params["w2"])
    else:
        if slab_n is None:
            slab_n = 512 if Hp % 512 == 0 else 256
        assert Hp % slab_n == 0 and slab_n % 128 == 0
        nslabs = Hp // slab_n
        # Pre-slice so each (Hp, slab_n) column slab is a contiguous HBM block (cheap,
        # one-time packing; in a full model this would be done at weight-load time).
        w1s = params["w1"].reshape(Hp, nslabs, slab_n).transpose(1, 0, 2)
        w2s = params["w2"].reshape(Hp, nslabs, slab_n).transpose(1, 0, 2)
        hbm_spec = pl.BlockSpec(memory_space=pl.ANY)
        needed = (2 * Hp * slab_n * w_itemsize    # double-buffered weight slab
                  + tb * Hp * 2                   # bf16 layer-1 output scratch
                  + 8 * Hp * 4                    # bias block
                  + 2 * 2 * tb * Hp * 4           # double-buffered x / out tiles (f32)
                  + (4 << 20))
        vmem_limit = min(56 << 20, max(32 << 20, needed))
        cost = pl.CostEstimate(
            flops=flops, transcendentals=0,
            bytes_accessed=nt * resident_w_bytes + 2 * Hp * 4 + 2 * B * Hp * 4)
        out = pl.pallas_call(
            _streaming_kernel,
            out_shape=jax.ShapeDtypeStruct((B, Hp), x.dtype),
            grid_spec=pltpu.PrefetchScalarGridSpec(
                num_scalar_prefetch=0,
                grid=grid,
                in_specs=[row_spec, bias_spec, hbm_spec, hbm_spec],
                out_specs=row_spec,
                scratch_shapes=[
                    pltpu.VMEM((tb, Hp), jnp.bfloat16),         # layer-1 output
                    pltpu.VMEM((2, Hp, slab_n), jnp.bfloat16),  # weight-slab double buffer
                    pltpu.SemaphoreType.DMA((2,)),
                ]),
            compiler_params=pltpu.CompilerParams(
                dimension_semantics=("parallel",),
                vmem_limit_bytes=vmem_limit),
            cost_estimate=cost,
        )(xp, params["b"], w1s, w2s)

    return out[:, :H] if Hp != H else out


# ----------------------------------------------------------------------------- params / reference
def make_params(hidden_size, key, weight_dtype=jnp.bfloat16):
    """PyTorch-style init; fold eval-mode BatchNorm into the Linear weights/bias;
    zero-pad the hidden dim to a multiple of 256 (full MXU width on v6e/v7x)."""
    H = hidden_size
    Hp = _round_up(H, 256)
    ks = jax.random.split(key, 12)
    lim = 1.0 / jnp.sqrt(H)
    # nn.Linear(H, H): weight (H, H), bias (H,)
    W1 = jax.random.uniform(ks[0], (H, H), jnp.float32, -lim, lim)
    b1 = jax.random.uniform(ks[1], (H,), jnp.float32, -lim, lim)
    W2 = jax.random.uniform(ks[2], (H, H), jnp.float32, -lim, lim)
    b2 = jax.random.uniform(ks[3], (H,), jnp.float32, -lim, lim)
    # nn.BatchNorm1d(H): weight, bias, running_mean, running_var (eps=1e-5)
    g1 = 1.0 + 0.1 * jax.random.normal(ks[4], (H,), jnp.float32)
    beta1 = 0.1 * jax.random.normal(ks[5], (H,), jnp.float32)
    rm1 = 0.1 * jax.random.normal(ks[6], (H,), jnp.float32)
    rv1 = 1.0 + 0.1 * jax.random.uniform(ks[7], (H,), jnp.float32)
    g2 = 1.0 + 0.1 * jax.random.normal(ks[8], (H,), jnp.float32)
    beta2 = 0.1 * jax.random.normal(ks[9], (H,), jnp.float32)
    rm2 = 0.1 * jax.random.normal(ks[10], (H,), jnp.float32)
    rv2 = 1.0 + 0.1 * jax.random.uniform(ks[11], (H,), jnp.float32)
    eps = 1e-5

    s1 = g1 / jnp.sqrt(rv1 + eps)
    t1 = beta1 - rm1 * s1
    s2 = g2 / jnp.sqrt(rv2 + eps)
    t2 = beta2 - rm2 * s2

    # Fold BN affine into the Linear:  BN(x @ W.T + b) = x @ (W.T * s) + (b*s + t)
    w1f = (W1.T * s1[None, :]).astype(weight_dtype)
    w2f = (W2.T * s2[None, :]).astype(weight_dtype)
    bias1 = (b1 * s1 + t1).astype(jnp.float32)
    bias2 = (b2 * s2 + t2).astype(jnp.float32)

    pad_w = ((0, Hp - H), (0, Hp - H))
    return dict(
        w1=jnp.pad(w1f, pad_w),
        w2=jnp.pad(w2f, pad_w),
        b=jnp.pad(jnp.stack([bias1, bias2], axis=0), ((0, 0), (0, Hp - H))),
        H=H, Hp=Hp)


def reference(x, params):
    """Pure-JAX reference with identical numerics (bf16 MXU inputs, f32 accumulation)."""
    H, Hp = params["H"], params["Hp"]
    xp = jnp.pad(x, ((0, 0), (0, Hp - H))) if Hp != H else x
    xb = xp.astype(jnp.bfloat16)
    h = jnp.dot(xb, params["w1"], preferred_element_type=jnp.float32) + params["b"][0:1]
    h = jnp.maximum(h, 0.0)
    h2 = jnp.dot(h.astype(jnp.bfloat16), params["w2"],
                 preferred_element_type=jnp.float32) + params["b"][1:2]
    out = jnp.maximum(h2 + xp, 0.0)
    return out[:, :H]


if __name__ == "__main__":
    # Small test config: hidden = 128 (pads to one full 256-wide MXU tile), batch = 16
    # (two 8-row tiles -> exercises the 2-tile / parallel-axis path).
    B, H = 16, 128
    key = jax.random.PRNGKey(0)
    kx, kp = jax.random.split(key)
    x = jax.random.normal(kx, (B, H), jnp.float32)
    params = make_params(H, kp)

    ref = reference(x, params)

    # 1) VMEM-resident weight path (default for moderate H)
    out = jax.block_until_ready(residual_block(x, params))
    assert out.shape == (B, H)
    assert jnp.allclose(out, ref, atol=2e-3, rtol=2e-3), "resident path mismatch"

    # 2) HBM weight-streaming path (auto-selected for large H on v7x); forced here at a
    #    small shape (2 slabs of 128) to exercise the manual double-buffered DMAs.
    out_s = jax.block_until_ready(
        residual_block(x, params, force_stream=True, slab_n=128))
    assert jnp.allclose(out_s, ref, atol=2e-3, rtol=2e-3), "streaming path mismatch"

    print("KERNEL_OK")
</pallas_src>

<mosaic_0001>
module attributes {stable_mosaic.version = 11 : i64} {
  func.func @_resident_kernel(%arg0: i32, %arg1: memref<8x256xf32, #tpu.memory_space<vmem>>, %arg2: memref<256x256xbf16, #tpu.memory_space<vmem>>, %arg3: memref<2x256xf32, #tpu.memory_space<vmem>>, %arg4: memref<256x256xbf16, #tpu.memory_space<vmem>>, %arg5: memref<8x256xf32, #tpu.memory_space<vmem>>) attributes {dimension_semantics = [#tpu.dimension_semantics<parallel>], iteration_bounds = array<i64: 2>, scalar_prefetch = 0 : i64, scratch_operands = 0 : i64, tpu.core_type = #tpu.core_type<tc>, window_params = [{transform_indices = @transform_0, window_bounds = array<i64: 8, 256>}, {pipeline_mode = #tpu.pipeline_mode<synchronous>, transform_indices = @transform_1, window_bounds = array<i64: 256, 256>}, {pipeline_mode = #tpu.pipeline_mode<synchronous>, transform_indices = @transform_2, window_bounds = array<i64: 2, 256>}, {pipeline_mode = #tpu.pipeline_mode<synchronous>, transform_indices = @transform_3, window_bounds = array<i64: 256, 256>}, {transform_indices = @transform_4, window_bounds = array<i64: 8, 256>}]} {
    %c0 = arith.constant 0 : index
    %c0_0 = arith.constant 0 : index
    %0 = vector.load %arg1[%c0, %c0_0] : memref<8x256xf32, #tpu.memory_space<vmem>>, vector<8x256xf32>
    %1 = arith.truncf %0 : vector<8x256xf32> to vector<8x256xbf16>
    %c0_1 = arith.constant 0 : index
    %c0_2 = arith.constant 0 : index
    %2 = vector.load %arg2[%c0_1, %c0_2] : memref<256x256xbf16, #tpu.memory_space<vmem>>, vector<256x256xbf16>
    %cst = arith.constant dense<0.000000e+00> : vector<8x256xf32>
    %3 = tpu.matmul %1, %2, %cst {dimension_numbers = #tpu.dot_dimension_numbers<[1], [0], [0], [1], [0, 0, 1, 1], [], []>} : vector<8x256xbf16>, vector<256x256xbf16>, vector<8x256xf32> -> vector<8x256xf32>
    %c0_3 = arith.constant 0 : index
    %c0_4 = arith.constant 0 : index
    %4 = vector.load %arg3[%c0_3, %c0_4] : memref<2x256xf32, #tpu.memory_space<vmem>>, vector<1x256xf32>
    %5 = vector.broadcast %4 : vector<1x256xf32> to vector<8x256xf32>
    %6 = arith.addf %3, %5 : vector<8x256xf32>
    %cst_5 = arith.constant 0.000000e+00 : f32
    %7 = vector.broadcast %cst_5 : f32 to vector<8x256xf32>
    %8 = arith.maximumf %6, %7 : vector<8x256xf32>
    %9 = arith.truncf %8 : vector<8x256xf32> to vector<8x256xbf16>
    %c0_6 = arith.constant 0 : index
    %c0_7 = arith.constant 0 : index
    %10 = vector.load %arg4[%c0_6, %c0_7] : memref<256x256xbf16, #tpu.memory_space<vmem>>, vector<256x256xbf16>
    %cst_8 = arith.constant dense<0.000000e+00> : vector<8x256xf32>
    %11 = tpu.matmul %9, %10, %cst_8 {dimension_numbers = #tpu.dot_dimension_numbers<[1], [0], [0], [1], [0, 0, 1, 1], [], []>} : vector<8x256xbf16>, vector<256x256xbf16>, vector<8x256xf32> -> vector<8x256xf32>
    %c1 = arith.constant 1 : index
    %c0_9 = arith.constant 0 : index
    %12 = vector.load %arg3[%c1, %c0_9] : memref<2x256xf32, #tpu.memory_space<vmem>>, vector<1x256xf32>
    %13 = vector.broadcast %12 : vector<1x256xf32> to vector<8x256xf32>
    %14 = arith.addf %11, %13 : vector<8x256xf32>
    %c0_10 = arith.constant 0 : index
    %c0_11 = arith.constant 0 : index
    %15 = vector.load %arg1[%c0_10, %c0_11] : memref<8x256xf32, #tpu.memory_space<vmem>>, vector<8x256xf32>
    %16 = arith.addf %14, %15 : vector<8x256xf32>
    %cst_12 = arith.constant 0.000000e+00 : f32
    %17 = vector.broadcast %cst_12 : f32 to vector<8x256xf32>
    %18 = arith.maximumf %16, %17 : vector<8x256xf32>
    %c0_13 = arith.constant 0 : index
    %c0_14 = arith.constant 0 : index
    %19 = vector.load %arg5[%c0_13, %c0_14] : memref<8x256xf32, #tpu.memory_space<vmem>>, vector<8x256xf32>
    tpu.vector_store %arg5[%c0_13, %c0_14], %18 {strides = array<i32>} : memref<8x256xf32, #tpu.memory_space<vmem>>, vector<8x256xf32>,
    return
  }
  func.func @transform_0(%arg0: i32) -> (i32, i32) {
    %c0_i32 = arith.constant 0 : i32
    %c0_i32_0 = arith.constant 0 : i32
    return %arg0, %c0_i32 : i32, i32
  }
  func.func @transform_1(%arg0: i32) -> (i32, i32) {
    %c0_i32 = arith.constant 0 : i32
    %c0_i32_0 = arith.constant 0 : i32
    %c0_i32_1 = arith.constant 0 : i32
    return %c0_i32, %c0_i32_0 : i32, i32
  }
  func.func @transform_2(%arg0: i32) -> (i32, i32) {
    %c0_i32 = arith.constant 0 : i32
    %c0_i32_0 = arith.constant 0 : i32
    %c0_i32_1 = arith.constant 0 : i32
    return %c0_i32, %c0_i32_0 : i32, i32
  }
  func.func @transform_3(%arg0: i32) -> (i32, i32) {
    %c0_i32 = arith.constant 0 : i32
    %c0_i32_0 = arith.constant 0 : i32
    %c0_i32_1 = arith.constant 0 : i32
    return %c0_i32, %c0_i32_0 : i32, i32
  }
  func.func @transform_4(%arg0: i32) -> (i32, i32) {
    %c0_i32 = arith.constant 0 : i32
    %c0_i32_0 = arith.constant 0 : i32
    return %arg0, %c0_i32 : i32, i32
  }
}

</mosaic_0001>

<llo_original>
// kernel: tpu_custom_call.1
$region0: #{tpu_custom_call.1}
  #allocation0 [shape = 'u32[]', space=smem, size = 0x4, offset = 0x4, fixed_abs, tag = 'smem constant byte address 0x4 - core index']
  #allocation1 [shape = 'u32[144,128]{1,0:T(1,128)}', space=vmem, size = 0x12000, scoped, tag = 'internal scratch']
  %s0 = inlined_call_operand.hbm [shape: f32[16,256], index: 0, kind: input, shape index: {}]
  %s1 = inlined_call_operand.hbm [shape: bf16[256,256], index: 1, kind: input, shape index: {}]
  %s2 = inlined_call_operand.vmem [shape: f32[2,256], index: 2, kind: input, shape index: {}]
  %s3 = inlined_call_operand.hbm [shape: bf16[256,256], index: 3, kind: input, shape index: {}]
  %s4 = inlined_call_operand.hbm [shape: f32[16,256], index: 4, kind: output, shape index: {}]
  %s5 = sld [smem:[#allocation0]]
  $region61: #{tpu_custom_call.1} parent=0
    _
  %s7 = ssub.s32 1, %s5
  %s8 = scalar_select 0, %s7, %s5
  $region1: #{tpu_custom_call.1} parent=0
    #allocation2 [shape = 'u8[16384]{0}', space=vmem, size = 0x4000, scoped, tag = 'input window, operand 0']
    #allocation3 [shape = 's32[2]{0}', space=sflag, size = 0x8, scoped, tag = 'scoped memory for tpu_custom_call.1']
    #allocation4 [shape = 's32[2]{0}', space=sflag, size = 0x8, scoped, tag = 'scoped memory for tpu_custom_call.1']
    #allocation5 [shape = 'u8[131072]{0}', space=vmem, size = 0x20000, scoped, tag = 'input window, operand 1, single buffered']
    #allocation6 [shape = 's32[1]{0}', space=sflag, size = 0x4, scoped, tag = 'scoped memory for tpu_custom_call.1']
    #allocation7 [shape = 'u8[131072]{0}', space=vmem, size = 0x20000, scoped, tag = 'input window, operand 3, single buffered']
    #allocation8 [shape = 'u8[16384]{0}', space=vmem, size = 0x4000, scoped, tag = 'output window, operand 0']
    %9 = vsyncpa [#allocation3], 0
    %s10 = scalar_lea.sflag [#allocation3], 1
    %11 = vsyncpa %s10, 0
    %12 = vsyncpa [#allocation6], 0
    %13 = vsyncpa [#allocation4], 0
    %s14 = scalar_lea.sflag [#allocation4], 1
    %15 = vsyncpa %s14, 0
    loop: start=0, step=1, limit=4
    $region2: #{tpu_custom_call.1} parent=1 // loop_pre_header
      _
    $region3: #{tpu_custom_call.1} parent=1 // loop_header
      %s17 = sphi 0, %s21
      %p18 = scmp.ge.s32.totalorder %s17, 4
      %s27 = sphi 0, %s29
      %s30 = sphi 0, %s27
      %s31 = sphi 0, %s30
      %s47 = sphi 0, %s31
      %s51 = sphi 0, %s51
      %s53 = sphi 0, %s51
      %s54 = sphi 0, %s53
      %s68 = sphi 0, %s54
      %s72 = sphi 0, %s72
      %s74 = sphi 0, %s72
      %s75 = sphi 0, %s74
      %s89 = sphi 0, %s75
      %s93 = sphi 0, %s93
      %s95 = sphi 0, %s93
      %s96 = sphi 0, %s95
      %s110 = sphi 0, %s96
      %s116 = sphi 0, %s118
      %s119 = sphi 0, %s116
      %s120 = sphi 0, %s119
      %s136 = sphi 0, %s120
    $region4: #{tpu_custom_call.1} parent=1 // loop_header_branch
      %20 = sbr.rel (%p18) target = $region8
    $region5: #{tpu_custom_call.1} parent=1 // loop_body
      %s22 = ssub.s32 %s17, 1
      %s23 = ssub.s32 %s17, 2
      %s24 = sadd.s32 %s17, 1
      %s25 = ssub.s32 %s17, %s24
      %p26 = scmp.eq.s32.totalorder %s25, 0
      %s28 = sadd.s32 %s27, 1
      %s29 = scalar_select %p26, %s27, %s28
      %p32 = pneg %p26
      %p33 = scmp.eq.s32.totalorder %s17, 1
      %p34 = por %p32, %p33
      %p35 = scmp.ne.s32.totalorder %s27, %s30
      %p36 = scmp.eq.s32.totalorder %s17, 0
      %p37 = por %p35, %p36
      %p38 = scmp.ne.s32.totalorder %s27, %s30
      %p39 = scmp.eq.s32.totalorder %s22, 1
      %p40 = por %p38, %p39
      %p41 = scmp.ne.s32.totalorder %s30, %s31
      %p42 = scmp.eq.s32.totalorder %s22, 0
      %p43 = por %p41, %p42
      %p44 = scmp.ne.s32.totalorder %s30, %s31
      %p45 = scmp.eq.s32.totalorder %s23, 1
      %p46 = por %p44, %p45
      %p48 = scmp.ne.s32.totalorder %s31, %s47
      %p49 = scmp.eq.s32.totalorder %s23, 0
      %p50 = por %p48, %p49
      %s52 = sadd.s32 %s51, 1
      %p55 = scmp.eq.s32.totalorder %s17, 1
      %p56 = scmp.ne.s32.totalorder %s51, %s53
      %p57 = scmp.eq.s32.totalorder %s17, 0
      %p58 = por %p56, %p57
      %p59 = scmp.ne.s32.totalorder %s51, %s53
      %p60 = scmp.eq.s32.totalorder %s22, 1
      %p61 = por %p59, %p60
      %p62 = scmp.ne.s32.totalorder %s53, %s54
      %p63 = scmp.eq.s32.totalorder %s22, 0
      %p64 = por %p62, %p63
      %p65 = scmp.ne.s32.totalorder %s53, %s54
      %p66 = scmp.eq.s32.totalorder %s23, 1
      %p67 = por %p65, %p66
      %p69 = scmp.ne.s32.totalorder %s54, %s68
      %p70 = scmp.eq.s32.totalorder %s23, 0
      %p71 = por %p69, %p70
      %s73 = sadd.s32 %s72, 1
      %p76 = scmp.eq.s32.totalorder %s17, 1
      %p77 = scmp.ne.s32.totalorder %s72, %s74
      %p78 = scmp.eq.s32.totalorder %s17, 0
      %p79 = por %p77, %p78
      %p80 = scmp.ne.s32.totalorder %s72, %s74
      %p81 = scmp.eq.s32.totalorder %s22, 1
      %p82 = por %p80, %p81
      %p83 = scmp.ne.s32.totalorder %s74, %s75
      %p84 = scmp.eq.s32.totalorder %s22, 0
      %p85 = por %p83, %p84
      %p86 = scmp.ne.s32.totalorder %s74, %s75
      %p87 = scmp.eq.s32.totalorder %s23, 1
      %p88 = por %p86, %p87
      %p90 = scmp.ne.s32.totalorder %s75, %s89
      %p91 = scmp.eq.s32.totalorder %s23, 0
      %p92 = por %p90, %p91
      %s94 = sadd.s32 %s93, 1
      %p97 = scmp.eq.s32.totalorder %s17, 1
      %p98 = scmp.ne.s32.totalorder %s93, %s95
      %p99 = scmp.eq.s32.totalorder %s17, 0
      %p100 = por %p98, %p99
      %p101 = scmp.ne.s32.totalorder %s93, %s95
      %p102 = scmp.eq.s32.totalorder %s22, 1
      %p103 = por %p101, %p102
      %p104 = scmp.ne.s32.totalorder %s95, %s96
      %p105 = scmp.eq.s32.totalorder %s22, 0
      %p106 = por %p104, %p105
      %p107 = scmp.ne.s32.totalorder %s95, %s96
      %p108 = scmp.eq.s32.totalorder %s23, 1
      %p109 = por %p107, %p108
      %p111 = scmp.ne.s32.totalorder %s96, %s110
      %p112 = scmp.eq.s32.totalorder %s23, 0
      %p113 = por %p111, %p112
      %s114 = ssub.s32 %s17, %s24
      %p115 = scmp.eq.s32.totalorder %s114, 0
      %s117 = sadd.s32 %s116, 1
      %s118 = scalar_select %p115, %s116, %s117
      %p121 = pneg %p115
      %p122 = scmp.eq.s32.totalorder %s17, 1
      %p123 = por %p121, %p122
      %p124 = scmp.ne.s32.totalorder %s116, %s119
      %p125 = scmp.eq.s32.totalorder %s17, 0
      %p126 = por %p124, %p125
      %p127 = scmp.ne.s32.totalorder %s116, %s119
      %p128 = scmp.eq.s32.totalorder %s22, 1
      %p129 = por %p127, %p128
      %p130 = scmp.ne.s32.totalorder %s119, %s120
      %p131 = scmp.eq.s32.totalorder %s22, 0
      %p132 = por %p130, %p131
      %p133 = scmp.ne.s32.totalorder %s119, %s120
      %p134 = scmp.eq.s32.totalorder %s23, 1
      %p135 = por %p133, %p134
      %p137 = scmp.ne.s32.totalorder %s120, %s136
      %p138 = scmp.eq.s32.totalorder %s23, 0
      %p139 = por %p137, %p138
      %p140 = scmp.le.s32.totalorder 1, %s17
      %p141 = scmp.lt.s32.totalorder %s17, 3
      %p142 = pnand %p140, %p141
      %p143 = pneg %p142
      // Predicated region
      $region9: #{tpu_custom_call.1} parent=5 // pred_check
        _
      $region10: #{tpu_custom_call.1} parent=5 // pred_check_branch
        %145 = sbr.rel (%p142) target = $region12
      $region11: #{tpu_custom_call.1} parent=5 // pred_region
        %s146 = ssub.s32 %s17, 1
        // Predicated region
        $region13: #{tpu_custom_call.1} parent=11 // pred_check
          %p147 = pneg %p64
        $region14: #{tpu_custom_call.1} parent=11 // pred_check_branch
          %149 = sbr.rel (%p147) target = $region16
        $region15: #{tpu_custom_call.1} parent=11 // pred_region
          %s151 = ssub.s32 4096, 4096
          %152 = vsyncadd [#allocation6], %s151
          %s153 = sshll.u32 [#allocation5], 4
          %s154 = int_to_ptr.vmem [resolvable:$true] %s153
          %159 = dma.hbm_to_vmem [thread:$0]  %s1, 4096, %s154, [#allocation6], 128, 128, 8
        $region16: #{tpu_custom_call.1} parent=11 // pred_fallthru
          _
        // Predicated region
        $region17: #{tpu_custom_call.1} parent=11 // pred_check
          %p160 = pneg %p85
        $region18: #{tpu_custom_call.1} parent=11 // pred_check_branch
          %162 = sbr.rel (%p160) target = $region20
        $region19: #{tpu_custom_call.1} parent=11 // pred_region
          _
        $region20: #{tpu_custom_call.1} parent=11 // pred_fallthru
          _
        // Predicated region
        $region21: #{tpu_custom_call.1} parent=11 // pred_check
          %p163 = pneg %p106
        $region22: #{tpu_custom_call.1} parent=11 // pred_check_branch
          %165 = sbr.rel (%p163) target = $region24
        $region23: #{tpu_custom_call.1} parent=11 // pred_region
          %s167 = ssub.s32 4096, 4096
          %168 = vsyncadd [#allocation6], %s167
          %s169 = sshll.u32 [#allocation7], 4
          %s170 = int_to_ptr.vmem [resolvable:$true] %s169
          %175 = dma.hbm_to_vmem [thread:$0]  %s3, 4096, %s170, [#allocation6], 128, 128, 8
        $region24: #{tpu_custom_call.1} parent=11 // pred_fallthru
          _
      $region12: #{tpu_custom_call.1} parent=5 // pred_fallthru
        _
      %p176 = scmp.lt.s32.totalorder %s17, 2
      // Predicated region
      $region25: #{tpu_custom_call.1} parent=5 // pred_check
        %p177 = pneg %p176
      $region26: #{tpu_custom_call.1} parent=5 // pred_check_branch
        %179 = sbr.rel (%p177) target = $region28
      $region27: #{tpu_custom_call.1} parent=5 // pred_region
        // Predicated region
        $region29: #{tpu_custom_call.1} parent=27 // pred_check
          %p180 = pneg %p37
        $region30: #{tpu_custom_call.1} parent=27 // pred_check_branch
          %182 = sbr.rel (%p180) target = $region32
        $region31: #{tpu_custom_call.1} parent=27 // pred_region
          %s183 = sand.u32 %s27, 1
          %s184 = scalar_lea.sflag [#allocation3], %s183
          %s185 = sand.u32 %s27, 1
          %s186 = smul.addr %s185, 16
          %s187 = scalar_lea.vmem [#allocation2], %s186
          %s189 = ssub.s32 256, 256
          %190 = vsyncadd %s184, %s189
          %s191 = smul.addr %s17, 2
          %s192 = smul.addr %s191, 128
          %s193 = scalar_lea.hbm %s0, %s192
          %s195 = sshll.u32 %s187, 4
          %s196 = int_to_ptr.vmem [resolvable:$true] %s195
          %198 = dma.hbm_to_vmem [thread:$0]  %s193, 256, %s196, %s184
        $region32: #{tpu_custom_call.1} parent=27 // pred_fallthru
          _
      $region28: #{tpu_custom_call.1} parent=5 // pred_fallthru
        _
      %p199 = scmp.le.s32.totalorder 1, %s17
      %p200 = scmp.lt.s32.totalorder %s17, 3
      %p201 = pnand %p199, %p200
      %p202 = pneg %p201
      // Predicated region
      $region33: #{tpu_custom_call.1} parent=5 // pred_check
        _
      $region34: #{tpu_custom_call.1} parent=5 // pred_check_branch
        %204 = sbr.rel (%p201) target = $region36
      $region35: #{tpu_custom_call.1} parent=5 // pred_region
        %s205 = ssub.s32 %s17, 1
        %s206 = sand.u32 %s30, 1
        %s207 = scalar_lea.sflag [#allocation3], %s206
        %s208 = sand.u32 %s30, 1
        %s209 = smul.addr %s208, 16
        %s210 = scalar_lea.vmem [#allocation2], %s209
        // Predicated region
        $region37: #{tpu_custom_call.1} parent=35 // pred_check
          %p211 = pneg %p43
        $region38: #{tpu_custom_call.1} parent=35 // pred_check_branch
          %213 = sbr.rel (%p211) target = $region40
        $region39: #{tpu_custom_call.1} parent=35 // pred_region
          %214 = dma.done %s207, 256
        $region40: #{tpu_custom_call.1} parent=35 // pred_fallthru
          _
        // Predicated region
        $region41: #{tpu_custom_call.1} parent=35 // pred_check
          %p215 = pneg %p64
        $region42: #{tpu_custom_call.1} parent=35 // pred_check_branch
          %217 = sbr.rel (%p215) target = $region44
        $region43: #{tpu_custom_call.1} parent=35 // pred_region
          %218 = dma.done [#allocation6], 4096
        $region44: #{tpu_custom_call.1} parent=35 // pred_fallthru
          _
        // Predicated region
        $region45: #{tpu_custom_call.1} parent=35 // pred_check
          %p219 = pneg %p106
        $region46: #{tpu_custom_call.1} parent=35 // pred_check_branch
          %221 = sbr.rel (%p219) target = $region48
        $region47: #{tpu_custom_call.1} parent=35 // pred_region
          %222 = dma.done [#allocation6], 4096
        $region48: #{tpu_custom_call.1} parent=35 // pred_fallthru
          _
        %s223 = sand.u32 %s30, 1
        %s224 = scalar_lea.sflag [#allocation3], %s223
        %s225 = sand.u32 %s30, 1
        %s226 = smul.addr %s225, 16
        %s227 = scalar_lea.vmem [#allocation2], %s226
        %p228 = pneg %p43
        %p229 = pneg %p40
        %p230 = pneg %p64
        %p231 = pneg %p61
        %p232 = pneg %p85
        %p233 = pneg %p82
        %p234 = pneg %p106
        %p235 = pneg %p103
        %p236 = pneg %p132
        %p237 = pneg %p129
        %s238 = sand.u32 %s119, 1
        %s239 = scalar_lea.sflag [#allocation4], %s238
        %s240 = sand.u32 %s119, 1
        %s241 = smul.addr %s240, 16
        %s242 = scalar_lea.vmem [#allocation8], %s241
        %v243 = vld [vmem:[%s210] sm:$0xff]
        %v244 = vld [vmem:[%s210 + $0x8] sm:$0xff]
        %v245 = vpack.c.bf16 %v243, %v243
        %v246 = vpack.c.bf16 %v244, %v244
        %v247 = vld [vmem:[#allocation5] sm:$0xff]
        %v248 = vld [vmem:[#allocation5 + $0x8] sm:$0xff]
        %v249 = vld [vmem:[#allocation5 + $0x10] sm:$0xff]
        %v250 = vld [vmem:[#allocation5 + $0x18] sm:$0xff]
        %v251 = vld [vmem:[#allocation5 + $0x20] sm:$0xff]
        %v252 = vld [vmem:[#allocation5 + $0x28] sm:$0xff]
        %v253 = vld [vmem:[#allocation5 + $0x30] sm:$0xff]
        %v254 = vld [vmem:[#allocation5 + $0x38] sm:$0xff]
        %v255 = vld [vmem:[#allocation5 + $0x40] sm:$0xff]
        %v256 = vld [vmem:[#allocation5 + $0x48] sm:$0xff]
        %v257 = vld [vmem:[#allocation5 + $0x50] sm:$0xff]
        %v258 = vld [vmem:[#allocation5 + $0x58] sm:$0xff]
        %v259 = vld [vmem:[#allocation5 + $0x60] sm:$0xff]
        %v260 = vld [vmem:[#allocation5 + $0x68] sm:$0xff]
        %v261 = vld [vmem:[#allocation5 + $0x70] sm:$0xff]
        %v262 = vld [vmem:[#allocation5 + $0x78] sm:$0xff]
        %v263 = vld [vmem:[#allocation5 + $0x80] sm:$0xff]
        %v264 = vld [vmem:[#allocation5 + $0x88] sm:$0xff]
        %v265 = vld [vmem:[#allocation5 + $0x90] sm:$0xff]
        %v266 = vld [vmem:[#allocation5 + $0x98] sm:$0xff]
        %v267 = vld [vmem:[#allocation5 + $0xa0] sm:$0xff]
        %v268 = vld [vmem:[#allocation5 + $0xa8] sm:$0xff]
        %v269 = vld [vmem:[#allocation5 + $0xb0] sm:$0xff]
        %v270 = vld [vmem:[#allocation5 + $0xb8] sm:$0xff]
        %v271 = vld [vmem:[#allocation5 + $0xc0] sm:$0xff]
        %v272 = vld [vmem:[#allocation5 + $0xc8] sm:$0xff]
        %v273 = vld [vmem:[#allocation5 + $0xd0] sm:$0xff]
        %v274 = vld [vmem:[#allocation5 + $0xd8] sm:$0xff]
        %v275 = vld [vmem:[#allocation5 + $0xe0] sm:$0xff]
        %v276 = vld [vmem:[#allocation5 + $0xe8] sm:$0xff]
        %v277 = vld [vmem:[#allocation5 + $0xf0] sm:$0xff]
        %v278 = vld [vmem:[#allocation5 + $0xf8] sm:$0xff]
        %v279 = vld [vmem:[%s2] ss:$2 sm:$0x3]
        %v281 = vlaneseq
        %v282 = vshrl.u32 %v281, 7
        %v283 = vsub.s32 0, %v282
        %v284 = vrot.slane %v279, %v283
        %v285 = vlaneseq
        %v286 = vshrl.u32 %v285, 7
        %v287 = vsub.s32 1, %v286
        %v288 = vrot.slane %v279, %v287
        %v323 = vunpack.c.l.b16 %v247
        %v324 = vunpack.c.h.b16 %v247
        %v325 = vunpack.c.l.b16 %v248
        %v326 = vunpack.c.h.b16 %v248
        %v327 = vunpack.c.l.b16 %v249
        %v328 = vunpack.c.h.b16 %v249
        %v329 = vunpack.c.l.b16 %v250
        %v330 = vunpack.c.h.b16 %v250
        %v331 = vunpack.c.l.b16 %v251
        %v332 = vunpack.c.h.b16 %v251
        %v333 = vunpack.c.l.b16 %v252
        %v334 = vunpack.c.h.b16 %v252
        %v335 = vunpack.c.l.b16 %v253
        %v336 = vunpack.c.h.b16 %v253
        %v337 = vunpack.c.l.b16 %v254
        %v338 = vunpack.c.h.b16 %v254
        %v339 = vunpack.c.l.b16 %v255
        %v340 = vunpack.c.h.b16 %v255
        %v341 = vunpack.c.l.b16 %v256
        %v342 = vunpack.c.h.b16 %v256
        %v343 = vunpack.c.l.b16 %v257
        %v344 = vunpack.c.h.b16 %v257
        %v345 = vunpack.c.l.b16 %v258
        %v346 = vunpack.c.h.b16 %v258
        %v347 = vunpack.c.l.b16 %v259
        %v348 = vunpack.c.h.b16 %v259
        %v349 = vunpack.c.l.b16 %v260
        %v350 = vunpack.c.h.b16 %v260
        %v351 = vunpack.c.l.b16 %v261
        %v352 = vunpack.c.h.b16 %v261
        %v353 = vunpack.c.l.b16 %v262
        %v354 = vunpack.c.h.b16 %v262
        %v355 = vunpack.c.l.b16 %v263
        %v356 = vunpack.c.h.b16 %v263
        %v357 = vunpack.c.l.b16 %v264
        %v358 = vunpack.c.h.b16 %v264
        %v359 = vunpack.c.l.b16 %v265
        %v360 = vunpack.c.h.b16 %v265
        %v361 = vunpack.c.l.b16 %v266
        %v362 = vunpack.c.h.b16 %v266
        %v363 = vunpack.c.l.b16 %v267
        %v364 = vunpack.c.h.b16 %v267
        %v365 = vunpack.c.l.b16 %v268
        %v366 = vunpack.c.h.b16 %v268
        %v367 = vunpack.c.l.b16 %v269
        %v368 = vunpack.c.h.b16 %v269
        %v369 = vunpack.c.l.b16 %v270
        %v370 = vunpack.c.h.b16 %v270
        %v371 = vunpack.c.l.b16 %v271
        %v372 = vunpack.c.h.b16 %v271
        %v373 = vunpack.c.l.b16 %v272
        %v374 = vunpack.c.h.b16 %v272
        %v375 = vunpack.c.l.b16 %v273
        %v376 = vunpack.c.h.b16 %v273
        %v377 = vunpack.c.l.b16 %v274
        %v378 = vunpack.c.h.b16 %v274
        %v379 = vunpack.c.l.b16 %v275
        %v380 = vunpack.c.h.b16 %v275
        %v381 = vunpack.c.l.b16 %v276
        %v382 = vunpack.c.h.b16 %v276
        %v383 = vunpack.c.l.b16 %v277
        %v384 = vunpack.c.h.b16 %v277
        %v385 = vunpack.c.l.b16 %v278
        %v386 = vunpack.c.h.b16 %v278
        %v387 = vpack.c.b16 %v325, %v323
        %v388 = vpack.c.b16 %v326, %v324
        %v389 = vpack.c.b16 %v329, %v327
        %v390 = vpack.c.b16 %v330, %v328
        %v391 = vpack.c.b16 %v333, %v331
        %v392 = vpack.c.b16 %v334, %v332
        %v393 = vpack.c.b16 %v337, %v335
        %v394 = vpack.c.b16 %v338, %v336
        %v395 = vpack.c.b16 %v341, %v339
        %v396 = vpack.c.b16 %v342, %v340
        %v397 = vpack.c.b16 %v345, %v343
        %v398 = vpack.c.b16 %v346, %v344
        %v399 = vpack.c.b16 %v349, %v347
        %v400 = vpack.c.b16 %v350, %v348
        %v401 = vpack.c.b16 %v353, %v351
        %v402 = vpack.c.b16 %v354, %v352
        %v403 = vpack.c.b16 %v357, %v355
        %v404 = vpack.c.b16 %v358, %v356
        %v405 = vpack.c.b16 %v361, %v359
        %v406 = vpack.c.b16 %v362, %v360
        %v407 = vpack.c.b16 %v365, %v363
        %v408 = vpack.c.b16 %v366, %v364
        %v409 = vpack.c.b16 %v369, %v367
        %v410 = vpack.c.b16 %v370, %v368
        %v411 = vpack.c.b16 %v373, %v371
        %v412 = vpack.c.b16 %v374, %v372
        %v413 = vpack.c.b16 %v377, %v375
        %v414 = vpack.c.b16 %v378, %v376
        %v415 = vpack.c.b16 %v381, %v379
        %v416 = vpack.c.b16 %v382, %v380
        %v417 = vpack.c.b16 %v385, %v383
        %v418 = vpack.c.b16 %v386, %v384
        %451 = vmatprep.subr.bf16.mxu0 %v388
        %452 = vmatpush1.bf16.msra.mxu0 %v387
        %453 = vmatprep.subr.bf16.mxu0 %v390
        %454 = vmatpush1.bf16.msra.mxu0 %v389
        %455 = vmatprep.subr.bf16.mxu0 %v392
        %456 = vmatpush1.bf16.msra.mxu0 %v391
        %457 = vmatprep.subr.bf16.mxu0 %v394
        %458 = vmatpush1.bf16.msra.mxu0 %v393
        %459 = vmatprep.subr.bf16.mxu0 %v396
        %460 = vmatpush1.bf16.msra.mxu0 %v395
        %461 = vmatprep.subr.bf16.mxu0 %v398
        %462 = vmatpush1.bf16.msra.mxu0 %v397
        %463 = vmatprep.subr.bf16.mxu0 %v400
        %464 = vmatpush1.bf16.msra.mxu0 %v399
        %465 = vmatprep.subr.bf16.mxu0 %v402
        %466 = vmatpush1.bf16.msra.mxu0 %v401
        %467 = vmatprep.subr.bf16.mxu0 %v404
        %468 = vmatpush1.bf16.msra.mxu0 %v403
        %469 = vmatprep.subr.bf16.mxu0 %v406
        %470 = vmatpush1.bf16.msra.mxu0 %v405
        %471 = vmatprep.subr.bf16.mxu0 %v408
        %472 = vmatpush1.bf16.msra.mxu0 %v407
        %473 = vmatprep.subr.bf16.mxu0 %v410
        %474 = vmatpush1.bf16.msra.mxu0 %v409
        %475 = vmatprep.subr.bf16.mxu0 %v412
        %476 = vmatpush1.bf16.msra.mxu0 %v411
        %477 = vmatprep.subr.bf16.mxu0 %v414
        %478 = vmatpush1.bf16.msra.mxu0 %v413
        %479 = vmatprep.subr.bf16.mxu0 %v416
        %480 = vmatpush1.bf16.msra.mxu0 %v415
        %481 = vmatprep.subr.bf16.mxu0 %v418
        %482 = vmatpush1.bf16.msra.mxu0 %v417
        %483 = vmatprep.mubr.bf16.mxu0 %v246
        %484 = vmatmul.mubr.bf16.gmra.mrb[0].mxu0 %v245
        %v485 = vpop.f32.mrb[0].mxu0
        %v486 = vadd.f32 %v284, %v485
        %v487 = vpop.f32.mrb[0].mxu0
        %v488 = vadd.f32 %v288, %v487
        %v489 = vpop.f32.mrb[0].mxu0
        %v490 = vpop.f32.mrb[0].mxu0
        %491 = vdwg.mxu0
        %v492 = vmax.f32 %v486, 0.0
        %v493 = vmax.f32 %v488, 0.0
        %v494 = vpack.c.bf16 %v492, %v492
        %v495 = vpack.c.bf16 %v493, %v493
        %v496 = vld [vmem:[#allocation7] sm:$0xff]
        %v497 = vld [vmem:[#allocation7 + $0x8] sm:$0xff]
        %v498 = vld [vmem:[#allocation7 + $0x10] sm:$0xff]
        %v499 = vld [vmem:[#allocation7 + $0x18] sm:$0xff]
        %v500 = vld [vmem:[#allocation7 + $0x20] sm:$0xff]
        %v501 = vld [vmem:[#allocation7 + $0x28] sm:$0xff]
        %v502 = vld [vmem:[#allocation7 + $0x30] sm:$0xff]
        %v503 = vld [vmem:[#allocation7 + $0x38] sm:$0xff]
        %v504 = vld [vmem:[#allocation7 + $0x40] sm:$0xff]
        %v505 = vld [vmem:[#allocation7 + $0x48] sm:$0xff]
        %v506 = vld [vmem:[#allocation7 + $0x50] sm:$0xff]
        %v507 = vld [vmem:[#allocation7 + $0x58] sm:$0xff]
        %v508 = vld [vmem:[#allocation7 + $0x60] sm:$0xff]
        %v509 = vld [vmem:[#allocation7 + $0x68] sm:$0xff]
        %v510 = vld [vmem:[#allocation7 + $0x70] sm:$0xff]
        %v511 = vld [vmem:[#allocation7 + $0x78] sm:$0xff]
        %v512 = vld [vmem:[#allocation7 + $0x80] sm:$0xff]
        %v513 = vld [vmem:[#allocation7 + $0x88] sm:$0xff]
        %v514 = vld [vmem:[#allocation7 + $0x90] sm:$0xff]
        %v515 = vld [vmem:[#allocation7 + $0x98] sm:$0xff]
        %v516 = vld [vmem:[#allocation7 + $0xa0] sm:$0xff]
        %v517 = vld [vmem:[#allocation7 + $0xa8] sm:$0xff]
        %v518 = vld [vmem:[#allocation7 + $0xb0] sm:$0xff]
        %v519 = vld [vmem:[#allocation7 + $0xb8] sm:$0xff]
        %v520 = vld [vmem:[#allocation7 + $0xc0] sm:$0xff]
        %v521 = vld [vmem:[#allocation7 + $0xc8] sm:$0xff]
        %v522 = vld [vmem:[#allocation7 + $0xd0] sm:$0xff]
        %v523 = vld [vmem:[#allocation7 + $0xd8] sm:$0xff]
        %v524 = vld [vmem:[#allocation7 + $0xe0] sm:$0xff]
        %v525 = vld [vmem:[#allocation7 + $0xe8] sm:$0xff]
        %v526 = vld [vmem:[#allocation7 + $0xf0] sm:$0xff]
        %v527 = vld [vmem:[#allocation7 + $0xf8] sm:$0xff]
        %s528 = scalar_lea.vmem %s2, 1
        %v529 = vld [vmem:[%s528] ss:$2 sm:$0x3]
        %v531 = vlaneseq
        %v532 = vshrl.u32 %v531, 7
        %v533 = vsub.s32 0, %v532
        %v534 = vrot.slane %v529, %v533
        %v535 = vlaneseq
        %v536 = vshrl.u32 %v535, 7
        %v537 = vsub.s32 1, %v536
        %v538 = vrot.slane %v529, %v537
        %v573 = vunpack.c.l.b16 %v496
        %v574 = vunpack.c.h.b16 %v496
        %v575 = vunpack.c.l.b16 %v497
        %v576 = vunpack.c.h.b16 %v497
        %v577 = vunpack.c.l.b16 %v498
        %v578 = vunpack.c.h.b16 %v498
        %v579 = vunpack.c.l.b16 %v499
        %v580 = vunpack.c.h.b16 %v499
        %v581 = vunpack.c.l.b16 %v500
        %v582 = vunpack.c.h.b16 %v500
        %v583 = vunpack.c.l.b16 %v501
        %v584 = vunpack.c.h.b16 %v501
        %v585 = vunpack.c.l.b16 %v502
        %v586 = vunpack.c.h.b16 %v502
        %v587 = vunpack.c.l.b16 %v503
        %v588 = vunpack.c.h.b16 %v503
        %v589 = vunpack.c.l.b16 %v504
        %v590 = vunpack.c.h.b16 %v504
        %v591 = vunpack.c.l.b16 %v505
        %v592 = vunpack.c.h.b16 %v505
        %v593 = vunpack.c.l.b16 %v506
        %v594 = vunpack.c.h.b16 %v506
        %v595 = vunpack.c.l.b16 %v507
        %v596 = vunpack.c.h.b16 %v507
        %v597 = vunpack.c.l.b16 %v508
        %v598 = vunpack.c.h.b16 %v508
        %v599 = vunpack.c.l.b16 %v509
        %v600 = vunpack.c.h.b16 %v509
        %v601 = vunpack.c.l.b16 %v510
        %v602 = vunpack.c.h.b16 %v510
        %v603 = vunpack.c.l.b16 %v511
        %v604 = vunpack.c.h.b16 %v511
        %v605 = vunpack.c.l.b16 %v512
        %v606 = vunpack.c.h.b16 %v512
        %v607 = vunpack.c.l.b16 %v513
        %v608 = vunpack.c.h.b16 %v513
        %v609 = vunpack.c.l.b16 %v514
        %v610 = vunpack.c.h.b16 %v514
        %v611 = vunpack.c.l.b16 %v515
        %v612 = vunpack.c.h.b16 %v515
        %v613 = vunpack.c.l.b16 %v516
        %v614 = vunpack.c.h.b16 %v516
        %v615 = vunpack.c.l.b16 %v517
        %v616 = vunpack.c.h.b16 %v517
        %v617 = vunpack.c.l.b16 %v518
        %v618 = vunpack.c.h.b16 %v518
        %v619 = vunpack.c.l.b16 %v519
        %v620 = vunpack.c.h.b16 %v519
        %v621 = vunpack.c.l.b16 %v520
        %v622 = vunpack.c.h.b16 %v520
        %v623 = vunpack.c.l.b16 %v521
        %v624 = vunpack.c.h.b16 %v521
        %v625 = vunpack.c.l.b16 %v522
        %v626 = vunpack.c.h.b16 %v522
        %v627 = vunpack.c.l.b16 %v523
        %v628 = vunpack.c.h.b16 %v523
        %v629 = vunpack.c.l.b16 %v524
        %v630 = vunpack.c.h.b16 %v524
        %v631 = vunpack.c.l.b16 %v525
        %v632 = vunpack.c.h.b16 %v525
        %v633 = vunpack.c.l.b16 %v526
        %v634 = vunpack.c.h.b16 %v526
        %v635 = vunpack.c.l.b16 %v527
        %v636 = vunpack.c.h.b16 %v527
        %v637 = vpack.c.b16 %v575, %v573
        %v638 = vpack.c.b16 %v576, %v574
        %v639 = vpack.c.b16 %v579, %v577
        %v640 = vpack.c.b16 %v580, %v578
        %v641 = vpack.c.b16 %v583, %v581
        %v642 = vpack.c.b16 %v584, %v582
        %v643 = vpack.c.b16 %v587, %v585
        %v644 = vpack.c.b16 %v588, %v586
        %v645 = vpack.c.b16 %v591, %v589
        %v646 = vpack.c.b16 %v592, %v590
        %v647 = vpack.c.b16 %v595, %v593
        %v648 = vpack.c.b16 %v596, %v594
        %v649 = vpack.c.b16 %v599, %v597
        %v650 = vpack.c.b16 %v600, %v598
        %v651 = vpack.c.b16 %v603, %v601
        %v652 = vpack.c.b16 %v604, %v602
        %v653 = vpack.c.b16 %v607, %v605
        %v654 = vpack.c.b16 %v608, %v606
        %v655 = vpack.c.b16 %v611, %v609
        %v656 = vpack.c.b16 %v612, %v610
        %v657 = vpack.c.b16 %v615, %v613
        %v658 = vpack.c.b16 %v616, %v614
        %v659 = vpack.c.b16 %v619, %v617
        %v660 = vpack.c.b16 %v620, %v618
        %v661 = vpack.c.b16 %v623, %v621
        %v662 = vpack.c.b16 %v624, %v622
        %v663 = vpack.c.b16 %v627, %v625
        %v664 = vpack.c.b16 %v628, %v626
        %v665 = vpack.c.b16 %v631, %v629
        %v666 = vpack.c.b16 %v632, %v630
        %v667 = vpack.c.b16 %v635, %v633
        %v668 = vpack.c.b16 %v636, %v634
        %701 = vmatprep.subr.bf16.mxu0 %v638
        %702 = vmatpush1.bf16.msra.mxu0 %v637
        %703 = vmatprep.subr.bf16.mxu0 %v640
        %704 = vmatpush1.bf16.msra.mxu0 %v639
        %705 = vmatprep.subr.bf16.mxu0 %v642
        %706 = vmatpush1.bf16.msra.mxu0 %v641
        %707 = vmatprep.subr.bf16.mxu0 %v644
        %708 = vmatpush1.bf16.msra.mxu0 %v643
        %709 = vmatprep.subr.bf16.mxu0 %v646
        %710 = vmatpush1.bf16.msra.mxu0 %v645
        %711 = vmatprep.subr.bf16.mxu0 %v648
        %712 = vmatpush1.bf16.msra.mxu0 %v647
        %713 = vmatprep.subr.bf16.mxu0 %v650
        %714 = vmatpush1.bf16.msra.mxu0 %v649
        %715 = vmatprep.subr.bf16.mxu0 %v652
        %716 = vmatpush1.bf16.msra.mxu0 %v651
        %717 = vmatprep.subr.bf16.mxu0 %v654
        %718 = vmatpush1.bf16.msra.mxu0 %v653
        %719 = vmatprep.subr.bf16.mxu0 %v656
        %720 = vmatpush1.bf16.msra.mxu0 %v655
        %721 = vmatprep.subr.bf16.mxu0 %v658
        %722 = vmatpush1.bf16.msra.mxu0 %v657
        %723 = vmatprep.subr.bf16.mxu0 %v660
        %724 = vmatpush1.bf16.msra.mxu0 %v659
        %725 = vmatprep.subr.bf16.mxu0 %v662
        %726 = vmatpush1.bf16.msra.mxu0 %v661
        %727 = vmatprep.subr.bf16.mxu0 %v664
        %728 = vmatpush1.bf16.msra.mxu0 %v663
        %729 = vmatprep.subr.bf16.mxu0 %v666
        %730 = vmatpush1.bf16.msra.mxu0 %v665
        %731 = vmatprep.subr.bf16.mxu0 %v668
        %732 = vmatpush1.bf16.msra.mxu0 %v667
        %733 = vmatprep.mubr.bf16.mxu0 %v495
        %734 = vmatmul.mubr.bf16.gmra.mrb[0].mxu0 %v494
        %v735 = vpop.f32.mrb[0].mxu0
        %v736 = vadd.f32 %v534, %v735
        %v737 = vpop.f32.mrb[0].mxu0
        %v738 = vadd.f32 %v538, %v737
        %v739 = vpop.f32.mrb[0].mxu0
        %v740 = vpop.f32.mrb[0].mxu0
        %741 = vdwg.mxu0
        %v742 = vadd.f32 %v736, %v243
        %v743 = vadd.f32 %v738, %v244
        %v744 = vmax.f32 %v742, 0.0
        %v745 = vmax.f32 %v743, 0.0
        %746 = vst [vmem:[%s242] sm:$0xff] %v744
        %747 = vst [vmem:[%s242 + $0x8] sm:$0xff] %v745
        %s748 = sand.u32 %s119, 1
        %s749 = scalar_lea.sflag [#allocation4], %s748
        %s750 = sand.u32 %s119, 1
        %s751 = smul.addr %s750, 16
        %s752 = scalar_lea.vmem [#allocation8], %s751
        // Predicated region
        $region49: #{tpu_custom_call.1} parent=35 // pred_check
          %p753 = pneg %p129
        $region50: #{tpu_custom_call.1} parent=35 // pred_check_branch
          %755 = sbr.rel (%p753) target = $region52
        $region51: #{tpu_custom_call.1} parent=35 // pred_region
          %s757 = ssub.s32 256, 256
          %758 = vsyncadd %s749, %s757
          %s759 = smul.addr %s22, 2
          %s760 = smul.addr %s759, 128
          %s761 = scalar_lea.hbm %s4, %s760
          %s763 = sshll.u32 %s752, 4
          %s764 = int_to_ptr.vmem [resolvable:$true] %s763
          %766 = dma.vmem_to_hbm [thread:$0]  %s764, 256, %s761, %s749
        $region52: #{tpu_custom_call.1} parent=35 // pred_fallthru
          _
      $region36: #{tpu_custom_call.1} parent=5 // pred_fallthru
        _
      %p767 = scmp.le.s32.totalorder 2, %s17
      // Predicated region
      $region53: #{tpu_custom_call.1} parent=5 // pred_check
        %p768 = pneg %p767
      $region54: #{tpu_custom_call.1} parent=5 // pred_check_branch
        %770 = sbr.rel (%p768) target = $region56
      $region55: #{tpu_custom_call.1} parent=5 // pred_region
        %s771 = ssub.s32 %s17, 2
        // Predicated region
        $region57: #{tpu_custom_call.1} parent=55 // pred_check
          %p772 = pneg %p135
        $region58: #{tpu_custom_call.1} parent=55 // pred_check_branch
          %774 = sbr.rel (%p772) target = $region60
        $region59: #{tpu_custom_call.1} parent=55 // pred_region
          %s775 = sand.u32 %s120, 1
          %s776 = scalar_lea.sflag [#allocation4], %s775
          %s777 = sand.u32 %s120, 1
          %s778 = smul.addr %s777, 16
          %s779 = scalar_lea.vmem [#allocation8], %s778
          %780 = dma.done %s776, 256
        $region60: #{tpu_custom_call.1} parent=55 // pred_fallthru
          _
      $region56: #{tpu_custom_call.1} parent=5 // pred_fallthru
        _
    $region6: #{tpu_custom_call.1} parent=1 // loop_footer
      %s21 = sadd.s32 1, %s17
    $region7: #{tpu_custom_call.1} parent=1 // loop_footer_branch
      %16 = sbr.rel target = $region3
    $region8: #{tpu_custom_call.1} parent=1 // loop_exit
      _
    %781 = vsyncpa [#allocation3], 1
    %s782 = scalar_lea.sflag [#allocation3], 1
    %783 = vsyncpa %s782, 1
    %784 = vsyncpa [#allocation6], 1
    %785 = vsyncpa [#allocation4], 1
    %s786 = scalar_lea.sflag [#allocation4], 1
    %787 = vsyncpa %s786, 1

</llo_original>
